<compile_context>
chip_gen: v6e
topology: v6e:2x2x1
jax: 0.10.0
libtpu: 0.0.40
codegen_flags: <defaults>
</compile_context>

<pallas_src>
import math

import jax
import jax.numpy as jnp
from jax.experimental import pallas as pl
from jax.experimental.pallas import tpu as pltpu


LANES = 128  # vreg lane width; last dim of every block


# ----------------------------- helpers ---------------------------------------


def _cdiv(a: int, b: int) -> int:
    return -(-a // b)


def _round_up(a: int, b: int) -> int:
    return _cdiv(a, b) * b


def _pow2_floor(n: int) -> int:
    return 1 << (max(1, int(n)).bit_length() - 1)


def _tpu_vmem_capacity_bytes(default: int = 64 * 1024 * 1024) -> int:
    """Physical VMEM per TensorCore; conservative 64 MiB (v7x) if the query fails."""
    try:
        return int(pltpu.get_tpu_info().vmem_capacity_bytes)
    except Exception:  # not on TPU yet / attribute mismatch -> conservative default
        return default


# ----------------------------- kernel -----------------------------------------


def _tdp_kernel(tc_ref, p0_ref, p1_ref, nw_ref, nb_ref, o_ref):
    # tc_ref: SMEM (B,) f32 time condition (log_snr / 4)
    # p0/p1/nw/nb: (block_rows, 128) lane-dense parameter tiles
    # o_ref: (B, block_rows, 128)
    p0 = p0_ref[...].astype(jnp.float32)
    p1 = p1_ref[...].astype(jnp.float32)
    scale = nw_ref[...].astype(jnp.float32) + 1.0      # module passes nodecay_weight + 1
    bias = nb_ref[...].astype(jnp.float32)
    diff = p1 - p0

    b_planes = o_ref.shape[0]                           # static, small
    for b in range(b_planes):                           # per-plane: intermediates stay 2-D
        tc = tc_ref[b]                                  # scalar SMEM read
        z = tc * scale + bias
        # sigmoid(z) = rcp(1 + exp(-z)); exp + rcp both run on the EUP (approx rcp avoids
        # Newton-Raphson VALU refinement steps), keeping the VALU slot free.
        gate = pl.reciprocal(1.0 + jnp.exp(-z), approx=True)
        o_ref[b] = (p0 + gate * diff).astype(o_ref.dtype)   # (1-g)*p0 + g*p1


# ----------------------------- wrapper -----------------------------------------


def time_dependent_parameter(param0, param1, nodecay_weight, nodecay_bias, log_snr,
                             *, collapse_batch: bool = False,
                             vmem_target_bytes: int | None = None,
                             block_rows: int | None = None):
    """Returns curr_weight of shape (B, *param0.shape).

    `collapse_batch=True` mirrors seed_time()'s `torch.all(log_snr == log_snr[0])` branch
    (caller asserts log_snr is constant); it is a static flag so there is no host sync and
    no eager/jit divergence.
    """
    assert param0.shape == param1.shape == nodecay_weight.shape == nodecay_bias.shape
    log_snr = jnp.asarray(log_snr)
    assert log_snr.ndim == 1
    if collapse_batch:
        log_snr = log_snr[:1]
    time_condition = (log_snr / 4.0).astype(jnp.float32)
    B = time_condition.shape[0]

    shape = param0.shape
    total = math.prod(shape)
    dtype = param0.dtype
    itemsize = jnp.dtype(dtype).itemsize

    # ---- lane-dense flatten: (total,) -> (rows, 128); pad at most 127 tail elements ----
    lane_pad = (-total) % LANES

    def _flat(x):
        x = x.reshape(-1)
        if lane_pad:
            # one tiny copy (only when total is not 128-aligned); keeps every store lane-dense
            x = jnp.concatenate([x, jnp.zeros((lane_pad,), x.dtype)])
        return x.reshape(-1, LANES)

    p0, p1, nw, nb = (_flat(t) for t in (param0, param1, nodecay_weight, nodecay_bias))
    rows = p0.shape[0]

    # ---- generation-aware sizing --------------------------------------------------------
    sublane = 8 * max(1, 4 // itemsize)                 # 8 rows/vreg f32, 16 bf16, 32 i8
    vmem_cap = _tpu_vmem_capacity_bytes()
    small_vmem = vmem_cap <= 80 * 1024 * 1024           # v7x-like: 64 MiB VMEM / TC
    two_tensorcores = small_vmem                        # v7x has 2 TCs; v5e/v6e have 1
    if vmem_target_bytes is None:
        vmem_target_bytes = (20 << 20) if small_vmem else (32 << 20)
    row_cap = 1024 if small_vmem else 2048
    vmem_ceiling = (40 << 20) if small_vmem else (64 << 20)

    # Only the pipelined (double-buffered) buffers count: 4 inputs + B output planes.
    per_row_bytes = LANES * itemsize * (4 + B) * 2
    if block_rows is None:
        budget_rows = max(1, int(vmem_target_bytes / (per_row_bytes * 1.2)))  # 20% headroom
        block_rows = max(sublane,
                         min(row_cap, _pow2_floor(budget_rows), _round_up(rows, sublane)))
        if two_tensorcores:
            # keep >= 2 grid steps so both TensorCores get work (v7x only)
            while block_rows >= 2 * sublane and _cdiv(rows, block_rows) < 2:
                block_rows = max(sublane, (block_rows // 2) // sublane * sublane)
    else:
        block_rows = max(sublane, min(_round_up(int(block_rows), sublane), row_cap))

    grid = (_cdiv(rows, block_rows),)                   # ragged last block: Pallas masks it

    vmem_limit_bytes = int(min(vmem_ceiling,
                               max(24 << 20, per_row_bytes * block_rows + (8 << 20))))

    out = pl.pallas_call(
        _tdp_kernel,
        out_shape=jax.ShapeDtypeStruct((B, rows, LANES), dtype),
        grid_spec=pl.GridSpec(
            grid=grid,
            in_specs=[
                pl.BlockSpec(memory_space=pltpu.MemorySpace.SMEM),   # time_condition (B,)
                pl.BlockSpec((block_rows, LANES), lambda i: (i, 0)),  # param0
                pl.BlockSpec((block_rows, LANES), lambda i: (i, 0)),  # param1
                pl.BlockSpec((block_rows, LANES), lambda i: (i, 0)),  # nodecay_weight
                pl.BlockSpec((block_rows, LANES), lambda i: (i, 0)),  # nodecay_bias
            ],
            out_specs=pl.BlockSpec((B, block_rows, LANES), lambda i: (0, i, 0)),
        ),
        compiler_params=pltpu.CompilerParams(
            dimension_semantics=("parallel",),
            vmem_limit_bytes=vmem_limit_bytes,
        ),
    )(time_condition, p0, p1, nw, nb)

    out = out.reshape(B, rows * LANES)
    if lane_pad:
        out = out[:, :total]
    return out.reshape((B,) + shape)


# ----------------------------- reference ---------------------------------------


def tdp_ref(param0, param1, nodecay_weight, nodecay_bias, log_snr, *, collapse_batch=False):
    log_snr = jnp.asarray(log_snr)
    if collapse_batch:
        log_snr = log_snr[:1]
    tc = (log_snr / 4.0).astype(jnp.float32).reshape((-1,) + (1,) * param0.ndim)
    gate = jax.nn.sigmoid(tc * (nodecay_weight.astype(jnp.float32) + 1.0)
                          + nodecay_bias.astype(jnp.float32))
    out = param0.astype(jnp.float32) * (1.0 - gate) + param1.astype(jnp.float32) * gate
    return out.astype(param0.dtype)


# ----------------------------- demo --------------------------------------------


if __name__ == "__main__":
    key = jax.random.PRNGKey(0)
    k0, k1, k2, k3 = jax.random.split(key, 4)

    shape = (16, 128)   # small parameter shape, already lane-dense
    param0 = 0.02 * jax.random.normal(k0, shape, dtype=jnp.float32)
    param1 = 0.02 * jax.random.normal(k1, shape, dtype=jnp.float32)
    # nodecay params init to zeros in the module; perturb slightly to exercise the math
    nodecay_weight = 0.1 * jax.random.normal(k2, shape, dtype=jnp.float32)
    nodecay_bias = 0.1 * jax.random.normal(k3, shape, dtype=jnp.float32)

    # case 1: per-sample log_snr (distinct values -> batched weight planes)
    log_snr = jnp.array([-2.0, 3.0], dtype=jnp.float32)
    out = jax.block_until_ready(
        time_dependent_parameter(param0, param1, nodecay_weight, nodecay_bias, log_snr))
    ref = tdp_ref(param0, param1, nodecay_weight, nodecay_bias, log_snr)
    assert out.shape == (2,) + shape
    assert jnp.allclose(out, ref, atol=1e-3, rtol=1e-3), "mismatch vs reference (batched)"

    # case 2: constant log_snr -> caller collapses the batch (seed_time semantics)
    log_snr_const = jnp.full((4,), 1.5, dtype=jnp.float32)
    out_c = jax.block_until_ready(
        time_dependent_parameter(param0, param1, nodecay_weight, nodecay_bias,
                                 log_snr_const, collapse_batch=True))
    ref_c = tdp_ref(param0, param1, nodecay_weight, nodecay_bias, log_snr_const,
                    collapse_batch=True)
    assert out_c.shape == (1,) + shape
    assert jnp.allclose(out_c, ref_c, atol=1e-3, rtol=1e-3), "mismatch (collapsed)"

    # case 3: non-128-aligned last dim (lane flatten + tiny tail pad) and a ragged grid
    #         (block_rows forced below rows so Pallas' edge-block masking is exercised)
    shape2 = (3, 40, 96)   # total = 11520 -> rows = 90 lane-dense rows
    pa = 0.02 * jax.random.normal(k0, shape2, dtype=jnp.float32)
    pb = 0.02 * jax.random.normal(k1, shape2, dtype=jnp.float32)
    nw2 = 0.1 * jax.random.normal(k2, shape2, dtype=jnp.float32)
    nb2 = 0.1 * jax.random.normal(k3, shape2, dtype=jnp.float32)
    out2 = jax.block_until_ready(
        time_dependent_parameter(pa, pb, nw2, nb2, log_snr, block_rows=32))
    ref2 = tdp_ref(pa, pb, nw2, nb2, log_snr)
    assert out2.shape == (2,) + shape2
    assert jnp.allclose(out2, ref2, atol=1e-3, rtol=1e-3), "mismatch (ragged/unaligned)"

    print("KERNEL_OK")
</pallas_src>

<mosaic_0001>
module attributes {stable_mosaic.version = 11 : i64} {
  func.func @_tdp_kernel(%arg0: i32, %arg1: memref<2xf32, #tpu.memory_space<smem>>, %arg2: memref<8x128xf32, #tpu.memory_space<vmem>>, %arg3: memref<8x128xf32, #tpu.memory_space<vmem>>, %arg4: memref<8x128xf32, #tpu.memory_space<vmem>>, %arg5: memref<8x128xf32, #tpu.memory_space<vmem>>, %arg6: memref<2x8x128xf32, #tpu.memory_space<vmem>>) attributes {dimension_semantics = [#tpu.dimension_semantics<parallel>], iteration_bounds = array<i64: 2>, scalar_prefetch = 0 : i64, scratch_operands = 0 : i64, tpu.core_type = #tpu.core_type<tc>, window_params = [{transform_indices = @transform_0, window_bounds = array<i64: 2>}, {transform_indices = @transform_1, window_bounds = array<i64: 8, 128>}, {transform_indices = @transform_2, window_bounds = array<i64: 8, 128>}, {transform_indices = @transform_3, window_bounds = array<i64: 8, 128>}, {transform_indices = @transform_4, window_bounds = array<i64: 8, 128>}, {transform_indices = @transform_5, window_bounds = array<i64: 2, 8, 128>}]} {
    %c0 = arith.constant 0 : index
    %c0_0 = arith.constant 0 : index
    %0 = vector.load %arg2[%c0, %c0_0] : memref<8x128xf32, #tpu.memory_space<vmem>>, vector<8x128xf32>
    %c0_1 = arith.constant 0 : index
    %c0_2 = arith.constant 0 : index
    %1 = vector.load %arg3[%c0_1, %c0_2] : memref<8x128xf32, #tpu.memory_space<vmem>>, vector<8x128xf32>
    %c0_3 = arith.constant 0 : index
    %c0_4 = arith.constant 0 : index
    %2 = vector.load %arg4[%c0_3, %c0_4] : memref<8x128xf32, #tpu.memory_space<vmem>>, vector<8x128xf32>
    %cst = arith.constant 1.000000e+00 : f32
    %3 = vector.broadcast %cst : f32 to vector<8x128xf32>
    %4 = arith.addf %2, %3 : vector<8x128xf32>
    %c0_5 = arith.constant 0 : index
    %c0_6 = arith.constant 0 : index
    %5 = vector.load %arg5[%c0_5, %c0_6] : memref<8x128xf32, #tpu.memory_space<vmem>>, vector<8x128xf32>
    %6 = arith.subf %1, %0 : vector<8x128xf32>
    %c0_7 = arith.constant 0 : index
    %7 = memref.load %arg1[%c0_7] : memref<2xf32, #tpu.memory_space<smem>>
    %8 = vector.broadcast %7 : f32 to vector<8x128xf32>
    %9 = arith.mulf %8, %4 : vector<8x128xf32>
    %10 = arith.addf %9, %5 : vector<8x128xf32>
    %cst_8 = arith.constant 0.000000e+00 : f32
    %11 = vector.broadcast %cst_8 : f32 to vector<8x128xf32>
    %12 = arith.subf %11, %10 : vector<8x128xf32>
    %13 = math.exp %12 : vector<8x128xf32>
    %cst_9 = arith.constant 1.000000e+00 : f32
    %14 = vector.broadcast %cst_9 : f32 to vector<8x128xf32>
    %15 = arith.addf %14, %13 : vector<8x128xf32>
    %16 = tpu.reciprocal %15 {approx = true} : vector<8x128xf32> -> vector<8x128xf32>
    %17 = arith.mulf %16, %6 : vector<8x128xf32>
    %18 = arith.addf %0, %17 : vector<8x128xf32>
    %c0_10 = arith.constant 0 : index
    %c0_11 = arith.constant 0 : index
    %c0_12 = arith.constant 0 : index
    %19 = vector.load %arg6[%c0_10, %c0_11, %c0_12] : memref<2x8x128xf32, #tpu.memory_space<vmem>>, vector<1x8x128xf32>
    %20 = vector.shape_cast %19 : vector<1x8x128xf32> to vector<8x128xf32>
    %21 = vector.shape_cast %18 : vector<8x128xf32> to vector<1x8x128xf32>
    tpu.vector_store %arg6[%c0_10, %c0_11, %c0_12], %21 {strides = array<i32>} : memref<2x8x128xf32, #tpu.memory_space<vmem>>, vector<1x8x128xf32>,
    %c1 = arith.constant 1 : index
    %22 = memref.load %arg1[%c1] : memref<2xf32, #tpu.memory_space<smem>>
    %23 = vector.broadcast %22 : f32 to vector<8x128xf32>
    %24 = arith.mulf %23, %4 : vector<8x128xf32>
    %25 = arith.addf %24, %5 : vector<8x128xf32>
    %cst_13 = arith.constant 0.000000e+00 : f32
    %26 = vector.broadcast %cst_13 : f32 to vector<8x128xf32>
    %27 = arith.subf %26, %25 : vector<8x128xf32>
    %28 = math.exp %27 : vector<8x128xf32>
    %cst_14 = arith.constant 1.000000e+00 : f32
    %29 = vector.broadcast %cst_14 : f32 to vector<8x128xf32>
    %30 = arith.addf %29, %28 : vector<8x128xf32>
    %31 = tpu.reciprocal %30 {approx = true} : vector<8x128xf32> -> vector<8x128xf32>
    %32 = arith.mulf %31, %6 : vector<8x128xf32>
    %33 = arith.addf %0, %32 : vector<8x128xf32>
    %c1_15 = arith.constant 1 : index
    %c0_16 = arith.constant 0 : index
    %c0_17 = arith.constant 0 : index
    %34 = vector.load %arg6[%c1_15, %c0_16, %c0_17] : memref<2x8x128xf32, #tpu.memory_space<vmem>>, vector<1x8x128xf32>
    %35 = vector.shape_cast %34 : vector<1x8x128xf32> to vector<8x128xf32>
    %36 = vector.shape_cast %33 : vector<8x128xf32> to vector<1x8x128xf32>
    tpu.vector_store %arg6[%c1_15, %c0_16, %c0_17], %36 {strides = array<i32>} : memref<2x8x128xf32, #tpu.memory_space<vmem>>, vector<1x8x128xf32>,
    return
  }
  func.func @transform_0(%arg0: i32) -> i32 {
    %c0_i32 = arith.constant 0 : i32
    %c0_i32_0 = arith.constant 0 : i32
    return %c0_i32 : i32
  }
  func.func @transform_1(%arg0: i32) -> (i32, i32) {
    %c0_i32 = arith.constant 0 : i32
    %c0_i32_0 = arith.constant 0 : i32
    return %arg0, %c0_i32 : i32, i32
  }
  func.func @transform_2(%arg0: i32) -> (i32, i32) {
    %c0_i32 = arith.constant 0 : i32
    %c0_i32_0 = arith.constant 0 : i32
    return %arg0, %c0_i32 : i32, i32
  }
  func.func @transform_3(%arg0: i32) -> (i32, i32) {
    %c0_i32 = arith.constant 0 : i32
    %c0_i32_0 = arith.constant 0 : i32
    return %arg0, %c0_i32 : i32, i32
  }
  func.func @transform_4(%arg0: i32) -> (i32, i32) {
    %c0_i32 = arith.constant 0 : i32
    %c0_i32_0 = arith.constant 0 : i32
    return %arg0, %c0_i32 : i32, i32
  }
  func.func @transform_5(%arg0: i32) -> (i32, i32, i32) {
    %c0_i32 = arith.constant 0 : i32
    %c0_i32_0 = arith.constant 0 : i32
    %c0_i32_1 = arith.constant 0 : i32
    return %c0_i32, %arg0, %c0_i32_0 : i32, i32, i32
  }
}

</mosaic_0001>

<llo_original>
// kernel: tpu_custom_call.1
$region0: #{tpu_custom_call.1}
  #allocation0 [shape = 'u32[]', space=smem, size = 0x4, offset = 0x4, fixed_abs, tag = 'smem constant byte address 0x4 - core index']
  #allocation1 [shape = 'u32[144,128]{1,0:T(1,128)}', space=vmem, size = 0x12000, scoped, tag = 'internal scratch']
  %s0 = inlined_call_operand.hbm [shape: f32[2], index: 0, kind: input, shape index: {}]
  %s1 = inlined_call_operand.hbm [shape: f32[16,128], index: 1, kind: input, shape index: {}]
  %s2 = inlined_call_operand.hbm [shape: f32[16,128], index: 2, kind: input, shape index: {}]
  %s3 = inlined_call_operand.hbm [shape: f32[16,128], index: 3, kind: input, shape index: {}]
  %s4 = inlined_call_operand.hbm [shape: f32[16,128], index: 4, kind: input, shape index: {}]
  %s5 = inlined_call_operand.hbm [shape: f32[2,16,128], index: 5, kind: output, shape index: {}]
  %s6 = sld [smem:[#allocation0]]
  $region73: #{tpu_custom_call.1} parent=0
    _
  %s8 = ssub.s32 1, %s6
  %s9 = scalar_select 0, %s8, %s6
  $region1: #{tpu_custom_call.1} parent=0
    #allocation2 [shape = 'u8[512]{0}', space=smem, size = 0x200, scoped, tag = 'input window, operand 0, single buffered']
    #allocation3 [shape = 's32[2]{0}', space=sflag, size = 0x8, scoped, tag = 'scoped memory for tpu_custom_call.1']
    #allocation4 [shape = 's32[2]{0}', space=sflag, size = 0x8, scoped, tag = 'scoped memory for tpu_custom_call.1']
    #allocation5 [shape = 's32[2]{0}', space=sflag, size = 0x8, scoped, tag = 'scoped memory for tpu_custom_call.1']
    #allocation6 [shape = 'u8[8192]{0}', space=vmem, size = 0x2000, scoped, tag = 'input window, operand 1']
    #allocation7 [shape = 'u8[8192]{0}', space=vmem, size = 0x2000, scoped, tag = 'input window, operand 2']
    #allocation8 [shape = 's32[2]{0}', space=sflag, size = 0x8, scoped, tag = 'scoped memory for tpu_custom_call.1']
    #allocation9 [shape = 'u8[8192]{0}', space=vmem, size = 0x2000, scoped, tag = 'input window, operand 3']
    #allocation10 [shape = 'u8[8192]{0}', space=vmem, size = 0x2000, scoped, tag = 'input window, operand 4']
    #allocation11 [shape = 's32[2]{0}', space=sflag, size = 0x8, scoped, tag = 'scoped memory for tpu_custom_call.1']
    #allocation12 [shape = 'u8[16384]{0}', space=vmem, size = 0x4000, scoped, tag = 'output window, operand 0']
    %10 = vsyncpa [#allocation5], 0
    %11 = vsyncpa [#allocation3], 0
    %s12 = scalar_lea.sflag [#allocation3], 1
    %13 = vsyncpa %s12, 0
    %14 = vsyncpa [#allocation8], 0
    %s15 = scalar_lea.sflag [#allocation8], 1
    %16 = vsyncpa %s15, 0
    %17 = vsyncpa [#allocation11], 0
    %s18 = scalar_lea.sflag [#allocation11], 1
    %19 = vsyncpa %s18, 0
    %20 = vsyncpa [#allocation4], 0
    %s21 = scalar_lea.sflag [#allocation4], 1
    %22 = vsyncpa %s21, 0
    loop: start=0, step=1, limit=4
    $region2: #{tpu_custom_call.1} parent=1 // loop_pre_header
      _
    $region3: #{tpu_custom_call.1} parent=1 // loop_header
      %s24 = sphi 0, %s28
      %p25 = scmp.ge.s32.totalorder %s24, 4
      %s32 = sphi 0, %s32
      %s34 = sphi 0, %s32
      %s35 = sphi 0, %s34
      %s49 = sphi 0, %s35
      %s55 = sphi 0, %s57
      %s58 = sphi 0, %s55
      %s59 = sphi 0, %s58
      %s75 = sphi 0, %s59
      %s81 = sphi 0, %s83
      %s84 = sphi 0, %s81
      %s85 = sphi 0, %s84
      %s101 = sphi 0, %s85
      %s107 = sphi 0, %s109
      %s110 = sphi 0, %s107
      %s111 = sphi 0, %s110
      %s127 = sphi 0, %s111
      %s133 = sphi 0, %s135
      %s136 = sphi 0, %s133
      %s137 = sphi 0, %s136
      %s153 = sphi 0, %s137
      %s159 = sphi 0, %s161
      %s162 = sphi 0, %s159
      %s163 = sphi 0, %s162
      %s179 = sphi 0, %s163
    $region4: #{tpu_custom_call.1} parent=1 // loop_header_branch
      %27 = sbr.rel (%p25) target = $region8
    $region5: #{tpu_custom_call.1} parent=1 // loop_body
      %s29 = ssub.s32 %s24, 1
      %s30 = ssub.s32 %s24, 2
      %s31 = sadd.s32 %s24, 1
      %s33 = sadd.s32 %s32, 1
      %p36 = scmp.eq.s32.totalorder %s24, 1
      %p37 = scmp.ne.s32.totalorder %s32, %s34
      %p38 = scmp.eq.s32.totalorder %s24, 0
      %p39 = por %p37, %p38
      %p40 = scmp.ne.s32.totalorder %s32, %s34
      %p41 = scmp.eq.s32.totalorder %s29, 1
      %p42 = por %p40, %p41
      %p43 = scmp.ne.s32.totalorder %s34, %s35
      %p44 = scmp.eq.s32.totalorder %s29, 0
      %p45 = por %p43, %p44
      %p46 = scmp.ne.s32.totalorder %s34, %s35
      %p47 = scmp.eq.s32.totalorder %s30, 1
      %p48 = por %p46, %p47
      %p50 = scmp.ne.s32.totalorder %s35, %s49
      %p51 = scmp.eq.s32.totalorder %s30, 0
      %p52 = por %p50, %p51
      %s53 = ssub.s32 %s24, %s31
      %p54 = scmp.eq.s32.totalorder %s53, 0
      %s56 = sadd.s32 %s55, 1
      %s57 = scalar_select %p54, %s55, %s56
      %p60 = pneg %p54
      %p61 = scmp.eq.s32.totalorder %s24, 1
      %p62 = por %p60, %p61
      %p63 = scmp.ne.s32.totalorder %s55, %s58
      %p64 = scmp.eq.s32.totalorder %s24, 0
      %p65 = por %p63, %p64
      %p66 = scmp.ne.s32.totalorder %s55, %s58
      %p67 = scmp.eq.s32.totalorder %s29, 1
      %p68 = por %p66, %p67
      %p69 = scmp.ne.s32.totalorder %s58, %s59
      %p70 = scmp.eq.s32.totalorder %s29, 0
      %p71 = por %p69, %p70
      %p72 = scmp.ne.s32.totalorder %s58, %s59
      %p73 = scmp.eq.s32.totalorder %s30, 1
      %p74 = por %p72, %p73
      %p76 = scmp.ne.s32.totalorder %s59, %s75
      %p77 = scmp.eq.s32.totalorder %s30, 0
      %p78 = por %p76, %p77
      %s79 = ssub.s32 %s24, %s31
      %p80 = scmp.eq.s32.totalorder %s79, 0
      %s82 = sadd.s32 %s81, 1
      %s83 = scalar_select %p80, %s81, %s82
      %p86 = pneg %p80
      %p87 = scmp.eq.s32.totalorder %s24, 1
      %p88 = por %p86, %p87
      %p89 = scmp.ne.s32.totalorder %s81, %s84
      %p90 = scmp.eq.s32.totalorder %s24, 0
      %p91 = por %p89, %p90
      %p92 = scmp.ne.s32.totalorder %s81, %s84
      %p93 = scmp.eq.s32.totalorder %s29, 1
      %p94 = por %p92, %p93
      %p95 = scmp.ne.s32.totalorder %s84, %s85
      %p96 = scmp.eq.s32.totalorder %s29, 0
      %p97 = por %p95, %p96
      %p98 = scmp.ne.s32.totalorder %s84, %s85
      %p99 = scmp.eq.s32.totalorder %s30, 1
      %p100 = por %p98, %p99
      %p102 = scmp.ne.s32.totalorder %s85, %s101
      %p103 = scmp.eq.s32.totalorder %s30, 0
      %p104 = por %p102, %p103
      %s105 = ssub.s32 %s24, %s31
      %p106 = scmp.eq.s32.totalorder %s105, 0
      %s108 = sadd.s32 %s107, 1
      %s109 = scalar_select %p106, %s107, %s108
      %p112 = pneg %p106
      %p113 = scmp.eq.s32.totalorder %s24, 1
      %p114 = por %p112, %p113
      %p115 = scmp.ne.s32.totalorder %s107, %s110
      %p116 = scmp.eq.s32.totalorder %s24, 0
      %p117 = por %p115, %p116
      %p118 = scmp.ne.s32.totalorder %s107, %s110
      %p119 = scmp.eq.s32.totalorder %s29, 1
      %p120 = por %p118, %p119
      %p121 = scmp.ne.s32.totalorder %s110, %s111
      %p122 = scmp.eq.s32.totalorder %s29, 0
      %p123 = por %p121, %p122
      %p124 = scmp.ne.s32.totalorder %s110, %s111
      %p125 = scmp.eq.s32.totalorder %s30, 1
      %p126 = por %p124, %p125
      %p128 = scmp.ne.s32.totalorder %s111, %s127
      %p129 = scmp.eq.s32.totalorder %s30, 0
      %p130 = por %p128, %p129
      %s131 = ssub.s32 %s24, %s31
      %p132 = scmp.eq.s32.totalorder %s131, 0
      %s134 = sadd.s32 %s133, 1
      %s135 = scalar_select %p132, %s133, %s134
      %p138 = pneg %p132
      %p139 = scmp.eq.s32.totalorder %s24, 1
      %p140 = por %p138, %p139
      %p141 = scmp.ne.s32.totalorder %s133, %s136
      %p142 = scmp.eq.s32.totalorder %s24, 0
      %p143 = por %p141, %p142
      %p144 = scmp.ne.s32.totalorder %s133, %s136
      %p145 = scmp.eq.s32.totalorder %s29, 1
      %p146 = por %p144, %p145
      %p147 = scmp.ne.s32.totalorder %s136, %s137
      %p148 = scmp.eq.s32.totalorder %s29, 0
      %p149 = por %p147, %p148
      %p150 = scmp.ne.s32.totalorder %s136, %s137
      %p151 = scmp.eq.s32.totalorder %s30, 1
      %p152 = por %p150, %p151
      %p154 = scmp.ne.s32.totalorder %s137, %s153
      %p155 = scmp.eq.s32.totalorder %s30, 0
      %p156 = por %p154, %p155
      %s157 = ssub.s32 %s24, %s31
      %p158 = scmp.eq.s32.totalorder %s157, 0
      %s160 = sadd.s32 %s159, 1
      %s161 = scalar_select %p158, %s159, %s160
      %p164 = pneg %p158
      %p165 = scmp.eq.s32.totalorder %s24, 1
      %p166 = por %p164, %p165
      %p167 = scmp.ne.s32.totalorder %s159, %s162
      %p168 = scmp.eq.s32.totalorder %s24, 0
      %p169 = por %p167, %p168
      %p170 = scmp.ne.s32.totalorder %s159, %s162
      %p171 = scmp.eq.s32.totalorder %s29, 1
      %p172 = por %p170, %p171
      %p173 = scmp.ne.s32.totalorder %s162, %s163
      %p174 = scmp.eq.s32.totalorder %s29, 0
      %p175 = por %p173, %p174
      %p176 = scmp.ne.s32.totalorder %s162, %s163
      %p177 = scmp.eq.s32.totalorder %s30, 1
      %p178 = por %p176, %p177
      %p180 = scmp.ne.s32.totalorder %s163, %s179
      %p181 = scmp.eq.s32.totalorder %s30, 0
      %p182 = por %p180, %p181
      %p183 = scmp.le.s32.totalorder 1, %s24
      %p184 = scmp.lt.s32.totalorder %s24, 3
      %p185 = pnand %p183, %p184
      %p186 = pneg %p185
      // Predicated region
      $region9: #{tpu_custom_call.1} parent=5 // pred_check
        _
      $region10: #{tpu_custom_call.1} parent=5 // pred_check_branch
        %188 = sbr.rel (%p185) target = $region12
      $region11: #{tpu_custom_call.1} parent=5 // pred_region
        %s189 = ssub.s32 %s24, 1
        // Predicated region
        $region13: #{tpu_custom_call.1} parent=11 // pred_check
          %p190 = pneg %p45
        $region14: #{tpu_custom_call.1} parent=11 // pred_check_branch
          %192 = sbr.rel (%p190) target = $region16
        $region15: #{tpu_custom_call.1} parent=11 // pred_region
          %s194 = ssub.s32 16, 16
          %195 = vsyncadd [#allocation5], %s194
          %198 = dma.hbm_to_smem %s0, 16, [#allocation2], [#allocation5]
        $region16: #{tpu_custom_call.1} parent=11 // pred_fallthru
          _
      $region12: #{tpu_custom_call.1} parent=5 // pred_fallthru
        _
      %p199 = scmp.lt.s32.totalorder %s24, 2
      // Predicated region
      $region17: #{tpu_custom_call.1} parent=5 // pred_check
        %p200 = pneg %p199
      $region18: #{tpu_custom_call.1} parent=5 // pred_check_branch
        %202 = sbr.rel (%p200) target = $region20
      $region19: #{tpu_custom_call.1} parent=5 // pred_region
        // Predicated region
        $region21: #{tpu_custom_call.1} parent=19 // pred_check
          %p203 = pneg %p65
        $region22: #{tpu_custom_call.1} parent=19 // pred_check_branch
          %205 = sbr.rel (%p203) target = $region24
        $region23: #{tpu_custom_call.1} parent=19 // pred_region
          %s206 = sand.u32 %s55, 1
          %s207 = scalar_lea.sflag [#allocation3], %s206
          %s208 = sand.u32 %s55, 1
          %s209 = smul.addr %s208, 8
          %s210 = scalar_lea.vmem [#allocation6], %s209
          %s212 = ssub.s32 128, 128
          %213 = vsyncadd %s207, %s212
          %s214 = smul.addr %s24, 128
          %s215 = scalar_lea.hbm %s1, %s214
          %s217 = sshll.u32 %s210, 4
          %s218 = int_to_ptr.vmem [resolvable:$true] %s217
          %220 = dma.hbm_to_vmem [thread:$0]  %s215, 128, %s218, %s207
        $region24: #{tpu_custom_call.1} parent=19 // pred_fallthru
          _
        // Predicated region
        $region25: #{tpu_custom_call.1} parent=19 // pred_check
          %p221 = pneg %p91
        $region26: #{tpu_custom_call.1} parent=19 // pred_check_branch
          %223 = sbr.rel (%p221) target = $region28
        $region27: #{tpu_custom_call.1} parent=19 // pred_region
          %s224 = sand.u32 %s24, 1
          %s225 = scalar_lea.sflag [#allocation8], %s224
          %s226 = sand.u32 %s81, 1
          %s227 = smul.addr %s226, 8
          %s228 = scalar_lea.vmem [#allocation7], %s227
          %s230 = ssub.s32 128, 128
          %231 = vsyncadd %s225, %s230
          %s232 = smul.addr %s24, 128
          %s233 = scalar_lea.hbm %s2, %s232
          %s235 = sshll.u32 %s228, 4
          %s236 = int_to_ptr.vmem [resolvable:$true] %s235
          %238 = dma.hbm_to_vmem [thread:$0]  %s233, 128, %s236, %s225
        $region28: #{tpu_custom_call.1} parent=19 // pred_fallthru
          _
        // Predicated region
        $region29: #{tpu_custom_call.1} parent=19 // pred_check
          %p239 = pneg %p117
        $region30: #{tpu_custom_call.1} parent=19 // pred_check_branch
          %241 = sbr.rel (%p239) target = $region32
        $region31: #{tpu_custom_call.1} parent=19 // pred_region
          %s242 = sand.u32 %s24, 1
          %s243 = scalar_lea.sflag [#allocation8], %s242
          %s244 = sand.u32 %s107, 1
          %s245 = smul.addr %s244, 8
          %s246 = scalar_lea.vmem [#allocation9], %s245
          %s248 = ssub.s32 128, 128
          %249 = vsyncadd %s243, %s248
          %s250 = smul.addr %s24, 128
          %s251 = scalar_lea.hbm %s3, %s250
          %s253 = sshll.u32 %s246, 4
          %s254 = int_to_ptr.vmem [resolvable:$true] %s253
          %256 = dma.hbm_to_vmem [thread:$0]  %s251, 128, %s254, %s243
        $region32: #{tpu_custom_call.1} parent=19 // pred_fallthru
          _
        // Predicated region
        $region33: #{tpu_custom_call.1} parent=19 // pred_check
          %p257 = pneg %p143
        $region34: #{tpu_custom_call.1} parent=19 // pred_check_branch
          %259 = sbr.rel (%p257) target = $region36
        $region35: #{tpu_custom_call.1} parent=19 // pred_region
          %s260 = sand.u32 %s133, 1
          %s261 = scalar_lea.sflag [#allocation11], %s260
          %s262 = sand.u32 %s133, 1
          %s263 = smul.addr %s262, 8
          %s264 = scalar_lea.vmem [#allocation10], %s263
          %s266 = ssub.s32 128, 128
          %267 = vsyncadd %s261, %s266
          %s268 = smul.addr %s24, 128
          %s269 = scalar_lea.hbm %s4, %s268
          %s271 = sshll.u32 %s264, 4
          %s272 = int_to_ptr.vmem [resolvable:$true] %s271
          %274 = dma.hbm_to_vmem [thread:$0]  %s269, 128, %s272, %s261
        $region36: #{tpu_custom_call.1} parent=19 // pred_fallthru
          _
      $region20: #{tpu_custom_call.1} parent=5 // pred_fallthru
        _
      %p275 = scmp.le.s32.totalorder 1, %s24
      %p276 = scmp.lt.s32.totalorder %s24, 3
      %p277 = pnand %p275, %p276
      %p278 = pneg %p277
      // Predicated region
      $region37: #{tpu_custom_call.1} parent=5 // pred_check
        _
      $region38: #{tpu_custom_call.1} parent=5 // pred_check_branch
        %280 = sbr.rel (%p277) target = $region40
      $region39: #{tpu_custom_call.1} parent=5 // pred_region
        %s281 = ssub.s32 %s24, 1
        // Predicated region
        $region41: #{tpu_custom_call.1} parent=39 // pred_check
          %p282 = pneg %p45
        $region42: #{tpu_custom_call.1} parent=39 // pred_check_branch
          %284 = sbr.rel (%p282) target = $region44
        $region43: #{tpu_custom_call.1} parent=39 // pred_region
          %285 = dma.done [#allocation5], 16
        $region44: #{tpu_custom_call.1} parent=39 // pred_fallthru
          _
        %s286 = sand.u32 %s58, 1
        %s287 = scalar_lea.sflag [#allocation3], %s286
        %s288 = sand.u32 %s58, 1
        %s289 = smul.addr %s288, 8
        %s290 = scalar_lea.vmem [#allocation6], %s289
        // Predicated region
        $region45: #{tpu_custom_call.1} parent=39 // pred_check
          %p291 = pneg %p71
        $region46: #{tpu_custom_call.1} parent=39 // pred_check_branch
          %293 = sbr.rel (%p291) target = $region48
        $region47: #{tpu_custom_call.1} parent=39 // pred_region
          %294 = dma.done %s287, 128
        $region48: #{tpu_custom_call.1} parent=39 // pred_fallthru
          _
        %s295 = sand.u32 %s29, 1
        %s296 = scalar_lea.sflag [#allocation8], %s295
        %s297 = sand.u32 %s84, 1
        %s298 = smul.addr %s297, 8
        %s299 = scalar_lea.vmem [#allocation7], %s298
        // Predicated region
        $region49: #{tpu_custom_call.1} parent=39 // pred_check
          %p300 = pneg %p97
        $region50: #{tpu_custom_call.1} parent=39 // pred_check_branch
          %302 = sbr.rel (%p300) target = $region52
        $region51: #{tpu_custom_call.1} parent=39 // pred_region
          %303 = dma.done %s296, 128
        $region52: #{tpu_custom_call.1} parent=39 // pred_fallthru
          _
        %s304 = sand.u32 %s29, 1
        %s305 = scalar_lea.sflag [#allocation8], %s304
        %s306 = sand.u32 %s110, 1
        %s307 = smul.addr %s306, 8
        %s308 = scalar_lea.vmem [#allocation9], %s307
        // Predicated region
        $region53: #{tpu_custom_call.1} parent=39 // pred_check
          %p309 = pneg %p123
        $region54: #{tpu_custom_call.1} parent=39 // pred_check_branch
          %311 = sbr.rel (%p309) target = $region56
        $region55: #{tpu_custom_call.1} parent=39 // pred_region
          %312 = dma.done %s305, 128
        $region56: #{tpu_custom_call.1} parent=39 // pred_fallthru
          _
        %s313 = sand.u32 %s136, 1
        %s314 = scalar_lea.sflag [#allocation11], %s313
        %s315 = sand.u32 %s136, 1
        %s316 = smul.addr %s315, 8
        %s317 = scalar_lea.vmem [#allocation10], %s316
        // Predicated region
        $region57: #{tpu_custom_call.1} parent=39 // pred_check
          %p318 = pneg %p149
        $region58: #{tpu_custom_call.1} parent=39 // pred_check_branch
          %320 = sbr.rel (%p318) target = $region60
        $region59: #{tpu_custom_call.1} parent=39 // pred_region
          %321 = dma.done %s314, 128
        $region60: #{tpu_custom_call.1} parent=39 // pred_fallthru
          _
        %322 = sfence
        %p323 = pneg %p45
        %p324 = pneg %p42
        %s325 = sand.u32 %s58, 1
        %s326 = scalar_lea.sflag [#allocation3], %s325
        %s327 = sand.u32 %s58, 1
        %s328 = smul.addr %s327, 8
        %s329 = scalar_lea.vmem [#allocation6], %s328
        %p330 = pneg %p71
        %p331 = pneg %p68
        %s332 = sand.u32 %s29, 1
        %s333 = scalar_lea.sflag [#allocation8], %s332
        %s334 = sand.u32 %s84, 1
        %s335 = smul.addr %s334, 8
        %s336 = scalar_lea.vmem [#allocation7], %s335
        %p337 = pneg %p97
        %p338 = pneg %p94
        %s339 = sand.u32 %s29, 1
        %s340 = scalar_lea.sflag [#allocation8], %s339
        %s341 = sand.u32 %s110, 1
        %s342 = smul.addr %s341, 8
        %s343 = scalar_lea.vmem [#allocation9], %s342
        %p344 = pneg %p123
        %p345 = pneg %p120
        %s346 = sand.u32 %s136, 1
        %s347 = scalar_lea.sflag [#allocation11], %s346
        %s348 = sand.u32 %s136, 1
        %s349 = smul.addr %s348, 8
        %s350 = scalar_lea.vmem [#allocation10], %s349
        %p351 = pneg %p149
        %p352 = pneg %p146
        %p353 = pneg %p175
        %p354 = pneg %p172
        %s355 = sand.u32 %s162, 1
        %s356 = scalar_lea.sflag [#allocation4], %s355
        %s357 = sand.u32 %s162, 1
        %s358 = smul.addr %s357, 16
        %s359 = scalar_lea.vmem [#allocation12], %s358
        %v360 = vld [vmem:[%s290] sm:$0xff]
        %v361 = vld [vmem:[%s299] sm:$0xff]
        %v362 = vld [vmem:[%s308] sm:$0xff]
        %v363 = vadd.f32 %v362, 1.0
        %v364 = vld [vmem:[%s317] sm:$0xff]
        %v365 = vsub.f32 %v361, %v360
        %s366 = sld [smem:[#allocation2]]
        %v367 = vstv %s366
        %v368 = vmul.f32 %v367, %v363
        %v369 = vadd.f32 %v368, %v364
        %v370 = vsub.f32 0.0, %v369
        %v371 = vmul.f32 %v370, 1.442695
        %v372 = vpow.pop %v371
        %v373 = vadd.f32 %v372, 1.0
        %v374 = vrcp.pop %v373
        %v375 = vmul.f32 %v374, %v365
        %v376 = vadd.f32 %v360, %v375
        %377 = vst [vmem:[%s359] sm:$0xff] %v376
        %s378 = sld [smem:[#allocation2 + $0x1]]
        %v379 = vstv %s378
        %v380 = vmul.f32 %v379, %v363
        %v381 = vadd.f32 %v380, %v364
        %v382 = vsub.f32 0.0, %v381
        %v383 = vmul.f32 %v382, 1.442695
        %v384 = vpow.pop %v383
        %v385 = vadd.f32 %v384, 1.0
        %v386 = vrcp.pop %v385
        %v387 = vmul.f32 %v386, %v365
        %v388 = vadd.f32 %v360, %v387
        %s389 = scalar_lea.vmem %s359, 8 [#allocation12]
        %390 = vst [vmem:[%s389] sm:$0xff] %v388
        %s391 = sand.u32 %s162, 1
        %s392 = scalar_lea.sflag [#allocation4], %s391
        %s393 = sand.u32 %s162, 1
        %s394 = smul.addr %s393, 16
        %s395 = scalar_lea.vmem [#allocation12], %s394
        // Predicated region
        $region61: #{tpu_custom_call.1} parent=39 // pred_check
          %p396 = pneg %p172
        $region62: #{tpu_custom_call.1} parent=39 // pred_check_branch
          %398 = sbr.rel (%p396) target = $region64
        $region63: #{tpu_custom_call.1} parent=39 // pred_region
          %s400 = ssub.s32 256, 256
          %401 = vsyncadd %s392, %s400
          %s402 = smul.addr %s29, 128
          %s403 = scalar_lea.hbm %s5, %s402
          %s404 = sshll.u32 %s395, 4
          %s405 = int_to_ptr.vmem [resolvable:$true] %s404
          %410 = dma.vmem_to_hbm [thread:$0]  %s405, 256, %s403, %s392, 128, 256, 8
        $region64: #{tpu_custom_call.1} parent=39 // pred_fallthru
          _
      $region40: #{tpu_custom_call.1} parent=5 // pred_fallthru
        _
      %p411 = scmp.le.s32.totalorder 2, %s24
      // Predicated region
      $region65: #{tpu_custom_call.1} parent=5 // pred_check
        %p412 = pneg %p411
      $region66: #{tpu_custom_call.1} parent=5 // pred_check_branch
        %414 = sbr.rel (%p412) target = $region68
      $region67: #{tpu_custom_call.1} parent=5 // pred_region
        %s415 = ssub.s32 %s24, 2
        // Predicated region
        $region69: #{tpu_custom_call.1} parent=67 // pred_check
          %p416 = pneg %p178
        $region70: #{tpu_custom_call.1} parent=67 // pred_check_branch
          %418 = sbr.rel (%p416) target = $region72
        $region71: #{tpu_custom_call.1} parent=67 // pred_region
          %s419 = sand.u32 %s163, 1
          %s420 = scalar_lea.sflag [#allocation4], %s419
          %s421 = sand.u32 %s163, 1
          %s422 = smul.addr %s421, 16
          %s423 = scalar_lea.vmem [#allocation12], %s422
          %424 = dma.done %s420, 256
        $region72: #{tpu_custom_call.1} parent=67 // pred_fallthru
          _
      $region68: #{tpu_custom_call.1} parent=5 // pred_fallthru
        _
    $region6: #{tpu_custom_call.1} parent=1 // loop_footer
      %s28 = sadd.s32 1, %s24
    $region7: #{tpu_custom_call.1} parent=1 // loop_footer_branch
      %23 = sbr.rel target = $region3
    $region8: #{tpu_custom_call.1} parent=1 // loop_exit
      _
    %425 = vsyncpa [#allocation3], 1
    %s426 = scalar_lea.sflag [#allocation3], 1
    %427 = vsyncpa %s426, 1
    %428 = vsyncpa [#allocation8], 1
    %s429 = scalar_lea.sflag [#allocation8], 1
    %430 = vsyncpa %s429, 1
    %431 = vsyncpa [#allocation11], 1
    %s432 = scalar_lea.sflag [#allocation11], 1
    %433 = vsyncpa %s432, 1
    %434 = vsyncpa [#allocation4], 1
    %s435 = scalar_lea.sflag [#allocation4], 1
    %436 = vsyncpa %s435, 1
    %437 = vsyncpa [#allocation5], 1
    %s438 = scalar_lea.sflag [#allocation5], 1
    %439 = vsyncpa %s438, 1

</llo_original>
